<compile_context>
chip_gen: v7x
topology: tpu7x:2x2x1
jax: 0.10.0
libtpu: 0.0.40
codegen_flags: <defaults>
</compile_context>

<pallas_src>
import jax
import jax.numpy as jnp
from jax.experimental import pallas as pl
from jax.experimental.pallas import tpu as pltpu

_LANE = 128
_TILE_ROWS = 512                      # rows per grid step for binary tasks (256 KiB f32)
_TILE_ELEMS = _TILE_ROWS * _LANE
_NEG_PAD = -1.0e4                     # finite (NOT -inf): avoids -inf*0=NaN in x*t


# ---------------------------------------------------------------------------
# trace-time helpers (layout / padding)
# ---------------------------------------------------------------------------

def _ceil_to(x, m):
    return ((int(x) + m - 1) // m) * m


def _prep_binary(pred, tgt, kind):
    """Flatten, pad to (rows_padded, 128) with zero-contribution pad values."""
    flat_p = jnp.ravel(pred)
    flat_t = jnp.ravel(tgt)
    n = int(flat_p.shape[0])
    rows_needed = max(1, -(-n // _LANE))
    tile_rows = min(_TILE_ROWS, _ceil_to(rows_needed, 8))
    rows_padded = _ceil_to(rows_needed, tile_rows)
    total = rows_padded * _LANE
    pad_val = 0.0 if kind == "mse" else _NEG_PAD
    p2d = jnp.pad(flat_p, (0, total - n), constant_values=pad_val).reshape(rows_padded, _LANE)
    t2d = jnp.pad(flat_t, (0, total - n)).reshape(rows_padded, _LANE)
    blocks = rows_padded // tile_rows
    return p2d, t2d, n, tile_rows, blocks


def _prep_ce(pred, tgt):
    """Lane-dense CE layout: logits (C, N_pad) (batch on lanes), int32 targets (1, N_pad).

    Padded batch columns get logits (0, -1e4, ...) and target 0 so ce == 0 exactly.
    """
    pred2d = jnp.reshape(pred, (-1, pred.shape[-1]))
    N, C = int(pred2d.shape[0]), int(pred2d.shape[1])
    zT = jnp.transpose(pred2d)                               # (C, N)
    tile_n = (_TILE_ELEMS // max(C, 1)) // _LANE * _LANE
    tile_n = max(_LANE, min(4096, tile_n))
    tile_n = min(tile_n, _ceil_to(N, _LANE))
    n_pad = _ceil_to(N, tile_n)
    pad_cols = n_pad - N
    if pad_cols:
        pad_blk = jnp.full((C, pad_cols), _NEG_PAD, zT.dtype)
        pad_blk = pad_blk.at[0, :].set(0.0)
        zT = jnp.concatenate([zT, pad_blk], axis=1)
    t_row = jnp.reshape(tgt, (1, -1)).astype(jnp.int32)
    if pad_cols:
        t_row = jnp.pad(t_row, ((0, 0), (0, pad_cols)))
    blocks = n_pad // tile_n
    return zT, t_row, N, C, tile_n, blocks
    # TODO(synk): for very large C, additionally tile the class axis.


def _static_pow(x, gamma):
    """x ** gamma for a static python gamma (integer gammas are repeated mults)."""
    g = float(gamma)
    if g == 0.0:
        return jnp.ones_like(x)
    if g.is_integer() and 0 < g <= 8:
        r = x
        for _ in range(int(g) - 1):
            r = r * x
        return r
    safe = jnp.maximum(x, 1e-30)
    return jnp.where(x > 0.0, jnp.exp(g * jnp.log(safe)), 0.0)


def _vmem_limit_bytes():
    """Derive the scoped-VMEM limit from the chip (v7x: 64 MiB physical)."""
    try:
        cap = int(pltpu.get_tpu_info().vmem_capacity_bytes)
        return int(max(32 * 1024 * 1024, min(64 * 1024 * 1024, cap // 2)))
    except Exception:
        return 32 * 1024 * 1024


# ---------------------------------------------------------------------------
# fused kernel builder
# ---------------------------------------------------------------------------

def _build_fused_kernel(task_infos, auto_weighting, n_steps):
    """refs: [pred_0, tgt_0, ..., lv_row, mask_row,
              losses_out, weights_out, total_out, acc_0, acc_1, ...]"""
    n_tasks = len(task_infos)
    n_in = 2 * n_tasks + 2

    def kernel(*refs):
        in_refs = refs[:n_in]
        losses_out, weights_out, total_out = refs[n_in:n_in + 3]
        acc_refs = refs[n_in + 3:]

        lv_ref = in_refs[2 * n_tasks]
        mask_ref = in_refs[2 * n_tasks + 1]

        step = pl.program_id(0)

        @pl.when(step == 0)
        def _():
            for acc in acc_refs:
                acc[...] = jnp.zeros_like(acc)

        # ---- per-task partial-sum accumulation (pure VALU adds per step) ----
        for ti, info in enumerate(task_infos):
            p_ref = in_refs[2 * ti]
            t_ref = in_refs[2 * ti + 1]
            acc = acc_refs[ti]
            kind = info["kind"]

            def accum(p_ref=p_ref, t_ref=t_ref, acc=acc, info=info, kind=kind):
                if kind in ("bce", "mse", "focal_bin"):
                    x = p_ref[...].astype(jnp.float32)          # (tile_rows, 128)
                    t = t_ref[...].astype(jnp.float32)
                    if kind == "mse":
                        d = x - t
                        elem = d * d                            # pads: 0
                    else:
                        e = jnp.exp(-jnp.abs(x))                # pads: exp(-1e4)=0
                        one_plus_e = 1.0 + e
                        ce = jnp.maximum(x, 0.0) - x * t + jnp.log(one_plus_e)
                        if kind == "bce":
                            elem = ce
                        else:
                            # sigmoid-based p_t (matches PyTorch, exact for soft labels)
                            sig_pos = pl.reciprocal(one_plus_e, approx=False)
                            sig = jnp.where(x >= 0.0, sig_pos, e * sig_pos)
                            p_t = (1.0 - t) + (2.0 * t - 1.0) * sig
                            elem = info["alpha"] * _static_pow(1.0 - p_t, info["gamma"]) * ce
                    acc[...] += elem
                else:  # 'ce' / 'focal_mc': logits (C, tile_n), int32 targets (1, tile_n)
                    z = p_ref[...].astype(jnp.float32)
                    tgt = t_ref[...]
                    m = jnp.max(z, axis=0, keepdims=True)
                    lse = m + jnp.log(jnp.sum(jnp.exp(z - m), axis=0, keepdims=True))
                    cls = jax.lax.broadcasted_iota(jnp.int32, z.shape, 0)
                    picked = jnp.sum(jnp.where(cls == tgt, z, 0.0), axis=0, keepdims=True)
                    ce_row = lse - picked                       # (1, tile_n); pads: 0
                    if kind == "focal_mc":
                        p_t = jnp.exp(-ce_row)                  # softmax prob of target
                        elem = info["alpha"] * _static_pow(1.0 - p_t, info["gamma"]) * ce_row
                    else:
                        elem = ce_row
                    acc[...] += elem

            if info["blocks"] == n_steps:
                accum()
            else:
                pl.when(step < info["blocks"])(accum)

        # ---- finalize: one XLU reduce per task + auto-weight combine ----
        @pl.when(step == n_steps - 1)
        def _():
            lane = jax.lax.broadcasted_iota(jnp.int32, (1, _LANE), 1)
            losses_row = jnp.zeros((1, _LANE), jnp.float32)
            for ti, info in enumerate(task_infos):
                loss = jnp.sum(acc_refs[ti][...]) / float(info["n_valid"])
                losses_row = jnp.where(lane == info["slot"], loss, losses_row)

            lv = lv_ref[...].astype(jnp.float32)                # (1, 128)
            msk = mask_ref[...].astype(jnp.float32)
            if auto_weighting:
                prec = jnp.exp(-lv)
                total = jnp.sum(msk * (prec * losses_row + lv))
                weights_row = prec
            else:
                total = jnp.sum(msk * lv * losses_row)          # lv carries manual weights
                weights_row = lv

            losses_out[...] = losses_row
            weights_out[...] = weights_row
            total_out[...] = jnp.where(lane == 0, total, 0.0)

    return kernel


# ---------------------------------------------------------------------------
# MultiTaskLoss (JAX / Pallas)
# ---------------------------------------------------------------------------

class MultiTaskLoss:
    def __init__(self, task_names, loss_types, task_weights=None, auto_weighting=True,
                 focal_alpha=1.0, focal_gamma=2.0):
        self.task_names = list(task_names)
        self.loss_types = dict(loss_types)
        self.auto_weighting = bool(auto_weighting)
        self.focal_alpha = float(focal_alpha)
        self.focal_gamma = float(focal_gamma)
        for lt in self.loss_types.values():
            if lt not in ("bce", "mse", "focal", "ce"):
                raise ValueError(f"Unknown loss type: {lt}")
        if task_weights is None:
            task_weights = {n: 1.0 for n in self.task_names}
        self.task_weights = task_weights
        self.log_vars = jnp.zeros((len(self.task_names),), jnp.float32)
        assert len(self.task_names) <= _LANE, "more than 128 tasks unsupported"

    def __call__(self, predictions, targets):
        T = len(self.task_names)
        task_infos, arrays = [], []
        mask = [0.0] * T

        for i, name in enumerate(self.task_names):
            if name not in predictions or name not in targets:
                continue
            pred, tgt = predictions[name], targets[name]
            lt = self.loss_types[name]

            if lt in ("bce", "mse") or (lt == "focal" and pred.shape[-1] == 1):
                kind = {"bce": "bce", "mse": "mse", "focal": "focal_bin"}[lt]
                p2d, t2d, n, tile_rows, blocks = _prep_binary(pred, tgt, kind)
                info = dict(name=name, kind=kind, slot=i, n_valid=n,
                            tile_rows=tile_rows, blocks=blocks,
                            alpha=self.focal_alpha, gamma=self.focal_gamma)
            else:  # 'ce' or multiclass focal
                kind = "ce" if lt == "ce" else "focal_mc"
                p2d, t2d, n, C, tile_n, blocks = _prep_ce(pred, tgt)
                info = dict(name=name, kind=kind, slot=i, n_valid=n,
                            n_classes=C, tile_n=tile_n, blocks=blocks,
                            alpha=self.focal_alpha, gamma=self.focal_gamma)
            task_infos.append(info)
            arrays += [p2d, t2d]
            mask[i] = 1.0

        if not task_infos:
            out = {"total_loss": jnp.float32(0.0)}
            if self.auto_weighting:
                for i, name in enumerate(self.task_names):
                    out[f"{name}_weight"] = jnp.exp(-self.log_vars[i])
            return out

        # lane-dense (1, 128) parameter rows
        lv_row = jnp.zeros((1, _LANE), jnp.float32)
        if self.auto_weighting:
            lv_row = lv_row.at[0, :T].set(self.log_vars)
        else:
            w = jnp.asarray([self.task_weights.get(n, 1.0) for n in self.task_names],
                            jnp.float32)
            lv_row = lv_row.at[0, :T].set(w)
        mask_row = jnp.zeros((1, _LANE), jnp.float32).at[0, :T].set(
            jnp.asarray(mask, jnp.float32))

        n_steps = max(info["blocks"] for info in task_infos)

        in_specs, scratch_shapes = [], []
        for info in task_infos:
            blocks = info["blocks"]
            if info["kind"] in ("bce", "mse", "focal_bin"):
                tr = info["tile_rows"]
                if blocks == n_steps:
                    imap = lambda s: (s, 0)
                else:  # shorter task: clamp -> block stays resident, no re-DMA
                    imap = lambda s, b=blocks: (jnp.minimum(s, b - 1), 0)
                in_specs += [pl.BlockSpec((tr, _LANE), imap),
                             pl.BlockSpec((tr, _LANE), imap)]
                scratch_shapes.append(pltpu.VMEM((tr, _LANE), jnp.float32))
            else:
                C, tn = info["n_classes"], info["tile_n"]
                if blocks == n_steps:
                    imap = lambda s: (0, s)
                else:
                    imap = lambda s, b=blocks: (0, jnp.minimum(s, b - 1))
                in_specs += [pl.BlockSpec((C, tn), imap),
                             pl.BlockSpec((1, tn), imap)]
                scratch_shapes.append(pltpu.VMEM((1, tn), jnp.float32))

        row_spec = pl.BlockSpec((1, _LANE), lambda s: (0, 0))
        in_specs += [row_spec, row_spec]

        kernel = _build_fused_kernel(task_infos, self.auto_weighting, n_steps)

        losses_row, weights_row, total_row = pl.pallas_call(
            kernel,
            out_shape=(
                jax.ShapeDtypeStruct((1, _LANE), jnp.float32),
                jax.ShapeDtypeStruct((1, _LANE), jnp.float32),
                jax.ShapeDtypeStruct((1, _LANE), jnp.float32),
            ),
            grid=(n_steps,),
            in_specs=in_specs,
            out_specs=(row_spec, row_spec, row_spec),
            scratch_shapes=scratch_shapes,
            compiler_params=pltpu.CompilerParams(
                dimension_semantics=("arbitrary",),   # reduction axis (scratch accumulators)
                vmem_limit_bytes=_vmem_limit_bytes(),
            ),
        )(*(arrays + [lv_row, mask_row]))

        losses = {}
        for info in task_infos:
            losses[f"{info['name']}_loss"] = losses_row[0, info["slot"]]
        losses["total_loss"] = total_row[0, 0]
        if self.auto_weighting:
            for i, name in enumerate(self.task_names):
                losses[f"{name}_weight"] = weights_row[0, i]
        return losses


# ---------------------------------------------------------------------------
# demo + reference check
# ---------------------------------------------------------------------------

if __name__ == "__main__":
    N, C = 8, 4
    key = jax.random.PRNGKey(0)
    k = jax.random.split(key, 8)

    task_names = ["toxicity", "score", "rare_event", "topic"]
    loss_types = {"toxicity": "bce", "score": "mse", "rare_event": "focal", "topic": "ce"}

    predictions = {
        "toxicity": jax.random.normal(k[0], (N, 1), jnp.float32),
        "score": jax.random.normal(k[1], (N, 1), jnp.float32),
        "rare_event": jax.random.normal(k[2], (N, 1), jnp.float32),
        "topic": jax.random.normal(k[3], (N, C), jnp.float32),
    }
    targets = {
        "toxicity": jax.random.bernoulli(k[4], 0.5, (N, 1)).astype(jnp.float32),
        "score": jax.random.normal(k[5], (N, 1), jnp.float32),
        "rare_event": jax.random.bernoulli(k[6], 0.3, (N,)).astype(jnp.float32),
        "topic": jax.random.randint(k[7], (N,), 0, C, jnp.int32),
    }

    mtl = MultiTaskLoss(task_names, loss_types, auto_weighting=True)
    out = mtl(predictions, targets)
    out = jax.tree_util.tree_map(jax.block_until_ready, out)

    # ---- pure-JAX reference (matches the PyTorch spec) ----
    def _ref_bce(x, t):
        x = x.reshape(-1); t = t.reshape(-1)
        return jnp.mean(jnp.maximum(x, 0) - x * t + jnp.log1p(jnp.exp(-jnp.abs(x))))

    r_tox = _ref_bce(predictions["toxicity"], targets["toxicity"])
    r_sco = jnp.mean((predictions["score"].reshape(-1)
                      - targets["score"].reshape(-1)) ** 2)
    xf = predictions["rare_event"].reshape(-1); tf = targets["rare_event"].reshape(-1)
    pf = jax.nn.sigmoid(xf)
    cef = jnp.maximum(xf, 0) - xf * tf + jnp.log1p(jnp.exp(-jnp.abs(xf)))
    ptf = pf * tf + (1 - pf) * (1 - tf)
    r_rare = jnp.mean(1.0 * (1 - ptf) ** 2.0 * cef)
    z = predictions["topic"]; y = targets["topic"]
    lse = jax.scipy.special.logsumexp(z, axis=-1)
    r_top = jnp.mean(lse - z[jnp.arange(N), y])
    r_total = r_tox + r_sco + r_rare + r_top      # log_vars are all zero

    assert jnp.allclose(out["toxicity_loss"], r_tox, rtol=1e-5, atol=1e-5)
    assert jnp.allclose(out["score_loss"], r_sco, rtol=1e-5, atol=1e-5)
    assert jnp.allclose(out["rare_event_loss"], r_rare, rtol=1e-5, atol=1e-5)
    assert jnp.allclose(out["topic_loss"], r_top, rtol=1e-5, atol=1e-5)
    assert jnp.allclose(out["total_loss"], r_total, rtol=1e-5, atol=1e-5)
    assert bool(jnp.isfinite(out["total_loss"])), "non-finite total loss"

    print("KERNEL_OK")
</pallas_src>

<mosaic_0001>
module attributes {stable_mosaic.version = 11 : i64} {
  func.func @kernel(%arg0: i32, %arg1: memref<8x128xf32, #tpu.memory_space<vmem>>, %arg2: memref<8x128xf32, #tpu.memory_space<vmem>>, %arg3: memref<8x128xf32, #tpu.memory_space<vmem>>, %arg4: memref<8x128xf32, #tpu.memory_space<vmem>>, %arg5: memref<8x128xf32, #tpu.memory_space<vmem>>, %arg6: memref<8x128xf32, #tpu.memory_space<vmem>>, %arg7: memref<4x128xf32, #tpu.memory_space<vmem>>, %arg8: memref<1x128xi32, #tpu.memory_space<vmem>>, %arg9: memref<1x128xf32, #tpu.memory_space<vmem>>, %arg10: memref<1x128xf32, #tpu.memory_space<vmem>>, %arg11: memref<1x128xf32, #tpu.memory_space<vmem>>, %arg12: memref<1x128xf32, #tpu.memory_space<vmem>>, %arg13: memref<1x128xf32, #tpu.memory_space<vmem>>, %arg14: memref<8x128xf32, #tpu.memory_space<vmem>>, %arg15: memref<8x128xf32, #tpu.memory_space<vmem>>, %arg16: memref<8x128xf32, #tpu.memory_space<vmem>>, %arg17: memref<1x128xf32, #tpu.memory_space<vmem>>) attributes {dimension_semantics = [#tpu.dimension_semantics<arbitrary>], iteration_bounds = array<i64: 1>, scalar_prefetch = 0 : i64, scratch_operands = 4 : i64, tpu.core_type = #tpu.core_type<tc>, window_params = [{transform_indices = @transform_0, window_bounds = array<i64: 8, 128>}, {transform_indices = @transform_1, window_bounds = array<i64: 8, 128>}, {transform_indices = @transform_2, window_bounds = array<i64: 8, 128>}, {transform_indices = @transform_3, window_bounds = array<i64: 8, 128>}, {transform_indices = @transform_4, window_bounds = array<i64: 8, 128>}, {transform_indices = @transform_5, window_bounds = array<i64: 8, 128>}, {transform_indices = @transform_6, window_bounds = array<i64: 4, 128>}, {transform_indices = @transform_7, window_bounds = array<i64: 1, 128>}, {pipeline_mode = #tpu.pipeline_mode<synchronous>, transform_indices = @transform_8, window_bounds = array<i64: 1, 128>}, {pipeline_mode = #tpu.pipeline_mode<synchronous>, transform_indices = @transform_9, window_bounds = array<i64: 1, 128>}, {pipeline_mode = #tpu.pipeline_mode<synchronous>, transform_indices = @transform_10, window_bounds = array<i64: 1, 128>}, {pipeline_mode = #tpu.pipeline_mode<synchronous>, transform_indices = @transform_11, window_bounds = array<i64: 1, 128>}, {pipeline_mode = #tpu.pipeline_mode<synchronous>, transform_indices = @transform_12, window_bounds = array<i64: 1, 128>}]} {
    %c0_i32 = arith.constant 0 : i32
    %0 = arith.cmpi eq, %arg0, %c0_i32 : i32
    %1 = arith.extui %0 : i1 to i32
    %c0_i32_0 = arith.constant 0 : i32
    %2 = arith.cmpi ne, %1, %c0_i32_0 : i32
    scf.if %2 {
      %cst_49 = arith.constant 0.000000e+00 : f32
      %88 = vector.broadcast %cst_49 : f32 to vector<8x128xf32>
      %c0_50 = arith.constant 0 : index
      %c0_51 = arith.constant 0 : index
      %89 = vector.load %arg14[%c0_50, %c0_51] : memref<8x128xf32, #tpu.memory_space<vmem>>, vector<8x128xf32>
      tpu.vector_store %arg14[%c0_50, %c0_51], %88 {strides = array<i32>} : memref<8x128xf32, #tpu.memory_space<vmem>>, vector<8x128xf32>,
      %cst_52 = arith.constant 0.000000e+00 : f32
      %90 = vector.broadcast %cst_52 : f32 to vector<8x128xf32>
      %c0_53 = arith.constant 0 : index
      %c0_54 = arith.constant 0 : index
      %91 = vector.load %arg15[%c0_53, %c0_54] : memref<8x128xf32, #tpu.memory_space<vmem>>, vector<8x128xf32>
      tpu.vector_store %arg15[%c0_53, %c0_54], %90 {strides = array<i32>} : memref<8x128xf32, #tpu.memory_space<vmem>>, vector<8x128xf32>,
      %cst_55 = arith.constant 0.000000e+00 : f32
      %92 = vector.broadcast %cst_55 : f32 to vector<8x128xf32>
      %c0_56 = arith.constant 0 : index
      %c0_57 = arith.constant 0 : index
      %93 = vector.load %arg16[%c0_56, %c0_57] : memref<8x128xf32, #tpu.memory_space<vmem>>, vector<8x128xf32>
      tpu.vector_store %arg16[%c0_56, %c0_57], %92 {strides = array<i32>} : memref<8x128xf32, #tpu.memory_space<vmem>>, vector<8x128xf32>,
      %cst_58 = arith.constant 0.000000e+00 : f32
      %94 = vector.broadcast %cst_58 : f32 to vector<1x128xf32>
      %c0_59 = arith.constant 0 : index
      %c0_60 = arith.constant 0 : index
      %95 = vector.load %arg17[%c0_59, %c0_60] : memref<1x128xf32, #tpu.memory_space<vmem>>, vector<1x128xf32>
      tpu.vector_store %arg17[%c0_59, %c0_60], %94 {strides = array<i32>} : memref<1x128xf32, #tpu.memory_space<vmem>>, vector<1x128xf32>,
    } else {
    }
    %c0 = arith.constant 0 : index
    %c0_1 = arith.constant 0 : index
    %3 = vector.load %arg1[%c0, %c0_1] : memref<8x128xf32, #tpu.memory_space<vmem>>, vector<8x128xf32>
    %c0_2 = arith.constant 0 : index
    %c0_3 = arith.constant 0 : index
    %4 = vector.load %arg2[%c0_2, %c0_3] : memref<8x128xf32, #tpu.memory_space<vmem>>, vector<8x128xf32>
    %5 = math.absf %3 : vector<8x128xf32>
    %cst = arith.constant 0.000000e+00 : f32
    %6 = vector.broadcast %cst : f32 to vector<8x128xf32>
    %7 = arith.subf %6, %5 : vector<8x128xf32>
    %8 = math.exp %7 : vector<8x128xf32>
    %cst_4 = arith.constant 1.000000e+00 : f32
    %9 = vector.broadcast %cst_4 : f32 to vector<8x128xf32>
    %10 = arith.addf %9, %8 : vector<8x128xf32>
    %cst_5 = arith.constant 0.000000e+00 : f32
    %11 = vector.broadcast %cst_5 : f32 to vector<8x128xf32>
    %12 = arith.maximumf %3, %11 : vector<8x128xf32>
    %13 = arith.mulf %3, %4 : vector<8x128xf32>
    %14 = arith.subf %12, %13 : vector<8x128xf32>
    %15 = math.log %10 : vector<8x128xf32>
    %16 = arith.addf %14, %15 : vector<8x128xf32>
    %c0_6 = arith.constant 0 : index
    %c0_7 = arith.constant 0 : index
    %17 = vector.load %arg14[%c0_6, %c0_7] : memref<8x128xf32, #tpu.memory_space<vmem>>, vector<8x128xf32>
    %18 = arith.addf %17, %16 : vector<8x128xf32>
    %c0_8 = arith.constant 0 : index
    %c0_9 = arith.constant 0 : index
    %19 = vector.load %arg14[%c0_8, %c0_9] : memref<8x128xf32, #tpu.memory_space<vmem>>, vector<8x128xf32>
    tpu.vector_store %arg14[%c0_8, %c0_9], %18 {strides = array<i32>} : memref<8x128xf32, #tpu.memory_space<vmem>>, vector<8x128xf32>,
    %c0_10 = arith.constant 0 : index
    %c0_11 = arith.constant 0 : index
    %20 = vector.load %arg3[%c0_10, %c0_11] : memref<8x128xf32, #tpu.memory_space<vmem>>, vector<8x128xf32>
    %c0_12 = arith.constant 0 : index
    %c0_13 = arith.constant 0 : index
    %21 = vector.load %arg4[%c0_12, %c0_13] : memref<8x128xf32, #tpu.memory_space<vmem>>, vector<8x128xf32>
    %22 = arith.subf %20, %21 : vector<8x128xf32>
    %23 = arith.mulf %22, %22 : vector<8x128xf32>
    %c0_14 = arith.constant 0 : index
    %c0_15 = arith.constant 0 : index
    %24 = vector.load %arg15[%c0_14, %c0_15] : memref<8x128xf32, #tpu.memory_space<vmem>>, vector<8x128xf32>
    %25 = arith.addf %24, %23 : vector<8x128xf32>
    %c0_16 = arith.constant 0 : index
    %c0_17 = arith.constant 0 : index
    %26 = vector.load %arg15[%c0_16, %c0_17] : memref<8x128xf32, #tpu.memory_space<vmem>>, vector<8x128xf32>
    tpu.vector_store %arg15[%c0_16, %c0_17], %25 {strides = array<i32>} : memref<8x128xf32, #tpu.memory_space<vmem>>, vector<8x128xf32>,
    %c0_18 = arith.constant 0 : index
    %c0_19 = arith.constant 0 : index
    %27 = vector.load %arg5[%c0_18, %c0_19] : memref<8x128xf32, #tpu.memory_space<vmem>>, vector<8x128xf32>
    %c0_20 = arith.constant 0 : index
    %c0_21 = arith.constant 0 : index
    %28 = vector.load %arg6[%c0_20, %c0_21] : memref<8x128xf32, #tpu.memory_space<vmem>>, vector<8x128xf32>
    %29 = math.absf %27 : vector<8x128xf32>
    %cst_22 = arith.constant 0.000000e+00 : f32
    %30 = vector.broadcast %cst_22 : f32 to vector<8x128xf32>
    %31 = arith.subf %30, %29 : vector<8x128xf32>
    %32 = math.exp %31 : vector<8x128xf32>
    %cst_23 = arith.constant 1.000000e+00 : f32
    %33 = vector.broadcast %cst_23 : f32 to vector<8x128xf32>
    %34 = arith.addf %33, %32 : vector<8x128xf32>
    %cst_24 = arith.constant 0.000000e+00 : f32
    %35 = vector.broadcast %cst_24 : f32 to vector<8x128xf32>
    %36 = arith.maximumf %27, %35 : vector<8x128xf32>
    %37 = arith.mulf %27, %28 : vector<8x128xf32>
    %38 = arith.subf %36, %37 : vector<8x128xf32>
    %39 = math.log %34 : vector<8x128xf32>
    %40 = arith.addf %38, %39 : vector<8x128xf32>
    %41 = tpu.reciprocal %34 : vector<8x128xf32> -> vector<8x128xf32>
    %cst_25 = arith.constant 0.000000e+00 : f32
    %42 = vector.broadcast %cst_25 : f32 to vector<8x128xf32>
    %43 = arith.cmpf oge, %27, %42 : vector<8x128xf32>
    %44 = arith.mulf %32, %41 : vector<8x128xf32>
    %45 = arith.select %43, %41, %44 : vector<8x128xi1>, vector<8x128xf32>
    %cst_26 = arith.constant 1.000000e+00 : f32
    %46 = vector.broadcast %cst_26 : f32 to vector<8x128xf32>
    %47 = arith.subf %46, %28 : vector<8x128xf32>
    %cst_27 = arith.constant 2.000000e+00 : f32
    %48 = vector.broadcast %cst_27 : f32 to vector<8x128xf32>
    %49 = arith.mulf %48, %28 : vector<8x128xf32>
    %cst_28 = arith.constant 1.000000e+00 : f32
    %50 = vector.broadcast %cst_28 : f32 to vector<8x128xf32>
    %51 = arith.subf %49, %50 : vector<8x128xf32>
    %52 = arith.mulf %51, %45 : vector<8x128xf32>
    %53 = arith.addf %47, %52 : vector<8x128xf32>
    %cst_29 = arith.constant 1.000000e+00 : f32
    %54 = vector.broadcast %cst_29 : f32 to vector<8x128xf32>
    %55 = arith.subf %54, %53 : vector<8x128xf32>
    %56 = arith.mulf %55, %55 : vector<8x128xf32>
    %cst_30 = arith.constant 1.000000e+00 : f32
    %57 = vector.broadcast %cst_30 : f32 to vector<8x128xf32>
    %58 = arith.mulf %57, %56 : vector<8x128xf32>
    %59 = arith.mulf %58, %40 : vector<8x128xf32>
    %c0_31 = arith.constant 0 : index
    %c0_32 = arith.constant 0 : index
    %60 = vector.load %arg16[%c0_31, %c0_32] : memref<8x128xf32, #tpu.memory_space<vmem>>, vector<8x128xf32>
    %61 = arith.addf %60, %59 : vector<8x128xf32>
    %c0_33 = arith.constant 0 : index
    %c0_34 = arith.constant 0 : index
    %62 = vector.load %arg16[%c0_33, %c0_34] : memref<8x128xf32, #tpu.memory_space<vmem>>, vector<8x128xf32>
    tpu.vector_store %arg16[%c0_33, %c0_34], %61 {strides = array<i32>} : memref<8x128xf32, #tpu.memory_space<vmem>>, vector<8x128xf32>,
    %c0_35 = arith.constant 0 : index
    %c0_36 = arith.constant 0 : index
    %63 = vector.load %arg7[%c0_35, %c0_36] : memref<4x128xf32, #tpu.memory_space<vmem>>, vector<4x128xf32>
    %c0_37 = arith.constant 0 : index
    %c0_38 = arith.constant 0 : index
    %64 = vector.load %arg8[%c0_37, %c0_38] : memref<1x128xi32, #tpu.memory_space<vmem>>, vector<1x128xi32>
    %cst_39 = arith.constant dense<0xFF800000> : vector<128xf32>
    %65 = vector.multi_reduction <maximumf>, %63, %cst_39 [0] : vector<4x128xf32> to vector<128xf32>
    %66 = vector.shape_cast %65 : vector<128xf32> to vector<1x128xf32>
    %67 = vector.broadcast %66 : vector<1x128xf32> to vector<4x128xf32>
    %68 = arith.subf %63, %67 : vector<4x128xf32>
    %69 = math.exp %68 : vector<4x128xf32>
    %cst_40 = arith.constant dense<0.000000e+00> : vector<128xf32>
    %70 = vector.multi_reduction <add>, %69, %cst_40 [0] : vector<4x128xf32> to vector<128xf32>
    %71 = vector.shape_cast %70 : vector<128xf32> to vector<1x128xf32>
    %72 = math.log %71 : vector<1x128xf32>
    %73 = arith.addf %66, %72 : vector<1x128xf32>
    %74 = tpu.iota {dimensions = array<i32: 0>} : vector<4x128xi32>
    %75 = vector.broadcast %64 : vector<1x128xi32> to vector<4x128xi32>
    %76 = arith.cmpi eq, %74, %75 : vector<4x128xi32>
    %cst_41 = arith.constant 0.000000e+00 : f32
    %77 = vector.broadcast %cst_41 : f32 to vector<4x128xf32>
    %78 = arith.select %76, %63, %77 : vector<4x128xi1>, vector<4x128xf32>
    %cst_42 = arith.constant dense<0.000000e+00> : vector<128xf32>
    %79 = vector.multi_reduction <add>, %78, %cst_42 [0] : vector<4x128xf32> to vector<128xf32>
    %80 = vector.shape_cast %79 : vector<128xf32> to vector<1x128xf32>
    %81 = arith.subf %73, %80 : vector<1x128xf32>
    %c0_43 = arith.constant 0 : index
    %c0_44 = arith.constant 0 : index
    %82 = vector.load %arg17[%c0_43, %c0_44] : memref<1x128xf32, #tpu.memory_space<vmem>>, vector<1x128xf32>
    %83 = arith.addf %82, %81 : vector<1x128xf32>
    %c0_45 = arith.constant 0 : index
    %c0_46 = arith.constant 0 : index
    %84 = vector.load %arg17[%c0_45, %c0_46] : memref<1x128xf32, #tpu.memory_space<vmem>>, vector<1x128xf32>
    tpu.vector_store %arg17[%c0_45, %c0_46], %83 {strides = array<i32>} : memref<1x128xf32, #tpu.memory_space<vmem>>, vector<1x128xf32>,
    %c0_i32_47 = arith.constant 0 : i32
    %85 = arith.cmpi eq, %arg0, %c0_i32_47 : i32
    %86 = arith.extui %85 : i1 to i32
    %c0_i32_48 = arith.constant 0 : i32
    %87 = arith.cmpi ne, %86, %c0_i32_48 : i32
    scf.if %87 {
      %88 = tpu.iota {dimensions = array<i32: 1>} : vector<1x128xi32>
      %cst_49 = arith.constant 0.000000e+00 : f32
      %89 = vector.broadcast %cst_49 : f32 to vector<1x128xf32>
      %c0_50 = arith.constant 0 : index
      %c0_51 = arith.constant 0 : index
      %90 = vector.load %arg14[%c0_50, %c0_51] : memref<8x128xf32, #tpu.memory_space<vmem>>, vector<8x128xf32>
      %91 = vector.shape_cast %90 : vector<8x128xf32> to vector<1x8x128xf32>
      %cst_52 = arith.constant dense<0.000000e+00> : vector<1xf32>
      %92 = vector.multi_reduction <add>, %91, %cst_52 [1, 2] : vector<1x8x128xf32> to vector<1xf32>
      %93 = vector.shape_cast %92 : vector<1xf32> to vector<1x1x1xf32>
      %94 = vector.extract %93[0, 0, 0] : f32 from vector<1x1x1xf32>
      %cst_53 = arith.constant 8.000000e+00 : f32
      %95 = arith.divf %94, %cst_53 : f32
      %c0_i32_54 = arith.constant 0 : i32
      %96 = vector.broadcast %c0_i32_54 : i32 to vector<1x128xi32>
      %97 = arith.cmpi eq, %88, %96 : vector<1x128xi32>
      %98 = vector.broadcast %95 : f32 to vector<1x128xf32>
      %99 = arith.select %97, %98, %89 : vector<1x128xi1>, vector<1x128xf32>
      %c0_55 = arith.constant 0 : index
      %c0_56 = arith.constant 0 : index
      %100 = vector.load %arg15[%c0_55, %c0_56] : memref<8x128xf32, #tpu.memory_space<vmem>>, vector<8x128xf32>
      %101 = vector.shape_cast %100 : vector<8x128xf32> to vector<1x8x128xf32>
      %cst_57 = arith.constant dense<0.000000e+00> : vector<1xf32>
      %102 = vector.multi_reduction <add>, %101, %cst_57 [1, 2] : vector<1x8x128xf32> to vector<1xf32>
      %103 = vector.shape_cast %102 : vector<1xf32> to vector<1x1x1xf32>
      %104 = vector.extract %103[0, 0, 0] : f32 from vector<1x1x1xf32>
      %cst_58 = arith.constant 8.000000e+00 : f32
      %105 = arith.divf %104, %cst_58 : f32
      %c1_i32 = arith.constant 1 : i32
      %106 = vector.broadcast %c1_i32 : i32 to vector<1x128xi32>
      %107 = arith.cmpi eq, %88, %106 : vector<1x128xi32>
      %108 = vector.broadcast %105 : f32 to vector<1x128xf32>
      %109 = arith.select %107, %108, %99 : vector<1x128xi1>, vector<1x128xf32>
      %c0_59 = arith.constant 0 : index
      %c0_60 = arith.constant 0 : index
      %110 = vector.load %arg16[%c0_59, %c0_60] : memref<8x128xf32, #tpu.memory_space<vmem>>, vector<8x128xf32>
      %111 = vector.shape_cast %110 : vector<8x128xf32> to vector<1x8x128xf32>
      %cst_61 = arith.constant dense<0.000000e+00> : vector<1xf32>
      %112 = vector.multi_reduction <add>, %111, %cst_61 [1, 2] : vector<1x8x128xf32> to vector<1xf32>
      %113 = vector.shape_cast %112 : vector<1xf32> to vector<1x1x1xf32>
      %114 = vector.extract %113[0, 0, 0] : f32 from vector<1x1x1xf32>
      %cst_62 = arith.constant 8.000000e+00 : f32
      %115 = arith.divf %114, %cst_62 : f32
      %c2_i32 = arith.constant 2 : i32
      %116 = vector.broadcast %c2_i32 : i32 to vector<1x128xi32>
      %117 = arith.cmpi eq, %88, %116 : vector<1x128xi32>
      %118 = vector.broadcast %115 : f32 to vector<1x128xf32>
      %119 = arith.select %117, %118, %109 : vector<1x128xi1>, vector<1x128xf32>
      %c0_63 = arith.constant 0 : index
      %c0_64 = arith.constant 0 : index
      %120 = vector.load %arg17[%c0_63, %c0_64] : memref<1x128xf32, #tpu.memory_space<vmem>>, vector<1x128xf32>
      %121 = vector.shape_cast %120 : vector<1x128xf32> to vector<1x1x128xf32>
      %cst_65 = arith.constant dense<0.000000e+00> : vector<1xf32>
      %122 = vector.multi_reduction <add>, %121, %cst_65 [1, 2] : vector<1x1x128xf32> to vector<1xf32>
      %123 = vector.shape_cast %122 : vector<1xf32> to vector<1x1x1xf32>
      %124 = vector.extract %123[0, 0, 0] : f32 from vector<1x1x1xf32>
      %cst_66 = arith.constant 8.000000e+00 : f32
      %125 = arith.divf %124, %cst_66 : f32
      %c3_i32 = arith.constant 3 : i32
      %126 = vector.broadcast %c3_i32 : i32 to vector<1x128xi32>
      %127 = arith.cmpi eq, %88, %126 : vector<1x128xi32>
      %128 = vector.broadcast %125 : f32 to vector<1x128xf32>
      %129 = arith.select %127, %128, %119 : vector<1x128xi1>, vector<1x128xf32>
      %c0_67 = arith.constant 0 : index
      %c0_68 = arith.constant 0 : index
      %130 = vector.load %arg9[%c0_67, %c0_68] : memref<1x128xf32, #tpu.memory_space<vmem>>, vector<1x128xf32>
      %c0_69 = arith.constant 0 : index
      %c0_70 = arith.constant 0 : index
      %131 = vector.load %arg10[%c0_69, %c0_70] : memref<1x128xf32, #tpu.memory_space<vmem>>, vector<1x128xf32>
      %cst_71 = arith.constant 0.000000e+00 : f32
      %132 = vector.broadcast %cst_71 : f32 to vector<1x128xf32>
      %133 = arith.subf %132, %130 : vector<1x128xf32>
      %134 = math.exp %133 : vector<1x128xf32>
      %135 = arith.mulf %134, %129 : vector<1x128xf32>
      %136 = arith.addf %135, %130 : vector<1x128xf32>
      %137 = arith.mulf %131, %136 : vector<1x128xf32>
      %138 = vector.shape_cast %137 : vector<1x128xf32> to vector<1x1x128xf32>
      %cst_72 = arith.constant dense<0.000000e+00> : vector<1xf32>
      %139 = vector.multi_reduction <add>, %138, %cst_72 [1, 2] : vector<1x1x128xf32> to vector<1xf32>
      %140 = vector.shape_cast %139 : vector<1xf32> to vector<1x1x1xf32>
      %141 = vector.extract %140[0, 0, 0] : f32 from vector<1x1x1xf32>
      %c0_73 = arith.constant 0 : index
      %c0_74 = arith.constant 0 : index
      %142 = vector.load %arg11[%c0_73, %c0_74] : memref<1x128xf32, #tpu.memory_space<vmem>>, vector<1x128xf32>
      tpu.vector_store %arg11[%c0_73, %c0_74], %129 {strides = array<i32>} : memref<1x128xf32, #tpu.memory_space<vmem>>, vector<1x128xf32>,
      %c0_75 = arith.constant 0 : index
      %c0_76 = arith.constant 0 : index
      %143 = vector.load %arg12[%c0_75, %c0_76] : memref<1x128xf32, #tpu.memory_space<vmem>>, vector<1x128xf32>
      tpu.vector_store %arg12[%c0_75, %c0_76], %134 {strides = array<i32>} : memref<1x128xf32, #tpu.memory_space<vmem>>, vector<1x128xf32>,
      %c0_i32_77 = arith.constant 0 : i32
      %144 = vector.broadcast %c0_i32_77 : i32 to vector<1x128xi32>
      %145 = arith.cmpi eq, %88, %144 : vector<1x128xi32>
      %cst_78 = arith.constant 0.000000e+00 : f32
      %146 = vector.broadcast %141 : f32 to vector<1x128xf32>
      %147 = vector.broadcast %cst_78 : f32 to vector<1x128xf32>
      %148 = arith.select %145, %146, %147 : vector<1x128xi1>, vector<1x128xf32>
      %c0_79 = arith.constant 0 : index
      %c0_80 = arith.constant 0 : index
      %149 = vector.load %arg13[%c0_79, %c0_80] : memref<1x128xf32, #tpu.memory_space<vmem>>, vector<1x128xf32>
      tpu.vector_store %arg13[%c0_79, %c0_80], %148 {strides = array<i32>} : memref<1x128xf32, #tpu.memory_space<vmem>>, vector<1x128xf32>,
    } else {
    }
    return
  }
  func.func @transform_0(%arg0: i32) -> (i32, i32) {
    %c0_i32 = arith.constant 0 : i32
    %c0_i32_0 = arith.constant 0 : i32
    return %arg0, %c0_i32 : i32, i32
  }
  func.func @transform_1(%arg0: i32) -> (i32, i32) {
    %c0_i32 = arith.constant 0 : i32
    %c0_i32_0 = arith.constant 0 : i32
    return %arg0, %c0_i32 : i32, i32
  }
  func.func @transform_2(%arg0: i32) -> (i32, i32) {
    %c0_i32 = arith.constant 0 : i32
    %c0_i32_0 = arith.constant 0 : i32
    return %arg0, %c0_i32 : i32, i32
  }
  func.func @transform_3(%arg0: i32) -> (i32, i32) {
    %c0_i32 = arith.constant 0 : i32
    %c0_i32_0 = arith.constant 0 : i32
    return %arg0, %c0_i32 : i32, i32
  }
  func.func @transform_4(%arg0: i32) -> (i32, i32) {
    %c0_i32 = arith.constant 0 : i32
    %c0_i32_0 = arith.constant 0 : i32
    return %arg0, %c0_i32 : i32, i32
  }
  func.func @transform_5(%arg0: i32) -> (i32, i32) {
    %c0_i32 = arith.constant 0 : i32
    %c0_i32_0 = arith.constant 0 : i32
    return %arg0, %c0_i32 : i32, i32
  }
  func.func @transform_6(%arg0: i32) -> (i32, i32) {
    %c0_i32 = arith.constant 0 : i32
    %c0_i32_0 = arith.constant 0 : i32
    return %c0_i32, %arg0 : i32, i32
  }
  func.func @transform_7(%arg0: i32) -> (i32, i32) {
    %c0_i32 = arith.constant 0 : i32
    %c0_i32_0 = arith.constant 0 : i32
    return %c0_i32, %arg0 : i32, i32
  }
  func.func @transform_8(%arg0: i32) -> (i32, i32) {
    %c0_i32 = arith.constant 0 : i32
    %c0_i32_0 = arith.constant 0 : i32
    %c0_i32_1 = arith.constant 0 : i32
    return %c0_i32, %c0_i32_0 : i32, i32
  }
  func.func @transform_9(%arg0: i32) -> (i32, i32) {
    %c0_i32 = arith.constant 0 : i32
    %c0_i32_0 = arith.constant 0 : i32
    %c0_i32_1 = arith.constant 0 : i32
    return %c0_i32, %c0_i32_0 : i32, i32
  }
  func.func @transform_10(%arg0: i32) -> (i32, i32) {
    %c0_i32 = arith.constant 0 : i32
    %c0_i32_0 = arith.constant 0 : i32
    %c0_i32_1 = arith.constant 0 : i32
    return %c0_i32, %c0_i32_0 : i32, i32
  }
  func.func @transform_11(%arg0: i32) -> (i32, i32) {
    %c0_i32 = arith.constant 0 : i32
    %c0_i32_0 = arith.constant 0 : i32
    %c0_i32_1 = arith.constant 0 : i32
    return %c0_i32, %c0_i32_0 : i32, i32
  }
  func.func @transform_12(%arg0: i32) -> (i32, i32) {
    %c0_i32 = arith.constant 0 : i32
    %c0_i32_0 = arith.constant 0 : i32
    %c0_i32_1 = arith.constant 0 : i32
    return %c0_i32, %c0_i32_0 : i32, i32
  }
}

</mosaic_0001>

<llo_original>
// kernel: tpu_custom_call.1
$region0: #{tpu_custom_call.1}
  #allocation0 [shape = 'u32[]', space=smem, size = 0x4, offset = 0x4, fixed_abs, tag = 'smem constant byte address 0x4 - core index']
  #allocation1 [shape = 'u32[144,128]{1,0:T(1,128)}', space=vmem, size = 0x12000, scoped, tag = 'internal scratch']
  #allocation2 [shape = 'f32[8,128]{1,0:T(8,128)}', space=vmem, size = 0x1000, scoped, tag = 'scratch operand']
  #allocation3 [shape = 'f32[8,128]{1,0:T(8,128)}', space=vmem, size = 0x1000, scoped, tag = 'scratch operand']
  #allocation4 [shape = 'f32[8,128]{1,0:T(8,128)}', space=vmem, size = 0x1000, scoped, tag = 'scratch operand']
  #allocation5 [shape = 'f32[1,128]{1,0:T(1,128)}', space=vmem, size = 0x200, scoped, tag = 'scratch operand']
  %s0 = inlined_call_operand.hbm [shape: f32[8,128], index: 0, kind: input, shape index: {}]
  %s1 = inlined_call_operand.hbm [shape: f32[8,128], index: 1, kind: input, shape index: {}]
  %s2 = inlined_call_operand.hbm [shape: f32[8,128], index: 2, kind: input, shape index: {}]
  %s3 = inlined_call_operand.vmem [shape: f32[8,128], index: 3, kind: input, shape index: {}]
  %s4 = inlined_call_operand.hbm [shape: f32[8,128], index: 4, kind: input, shape index: {}]
  %s5 = inlined_call_operand.vmem [shape: f32[8,128], index: 5, kind: input, shape index: {}]
  %s6 = inlined_call_operand.vmem [shape: f32[4,128], index: 6, kind: input, shape index: {}]
  %s7 = inlined_call_operand.vmem [shape: s32[1,128], index: 7, kind: input, shape index: {}]
  %s8 = inlined_call_operand.vmem [shape: f32[1,128], index: 8, kind: input, shape index: {}]
  %s9 = inlined_call_operand.vmem [shape: f32[1,128], index: 9, kind: input, shape index: {}]
  %s10 = inlined_call_operand.hbm [shape: f32[1,128], index: 10, kind: output, shape index: {0}]
  %s11 = inlined_call_operand.hbm [shape: f32[1,128], index: 11, kind: output, shape index: {1}]
  %s12 = inlined_call_operand.hbm [shape: f32[1,128], index: 12, kind: output, shape index: {2}]
  %13 = xla_tuple %s10, %s11, %s12
  %s14 = sld [smem:[#allocation0]]
  $region90: #{tpu_custom_call.1} parent=0
    _
  %s16 = ssub.s32 1, %s14
  %s17 = scalar_select 0, %s16, %s14
  $region1: #{tpu_custom_call.1} parent=0
    #allocation6 [shape = 'u8[4096]{0}', space=vmem, size = 0x1000, scoped, tag = 'input window, operand 0, single buffered']
    #allocation7 [shape = 's32[1]{0}', space=sflag, size = 0x4, scoped, tag = 'scoped memory for tpu_custom_call.1']
    #allocation8 [shape = 's32[1]{0}', space=sflag, size = 0x4, scoped, tag = 'scoped memory for tpu_custom_call.1']
    #allocation9 [shape = 'u8[4096]{0}', space=vmem, size = 0x1000, scoped, tag = 'input window, operand 1, single buffered']
    #allocation10 [shape = 's32[1]{0}', space=sflag, size = 0x4, scoped, tag = 'scoped memory for tpu_custom_call.1']
    #allocation11 [shape = 'u8[4096]{0}', space=vmem, size = 0x1000, scoped, tag = 'input window, operand 2, single buffered']
    #allocation12 [shape = 'u8[4096]{0}', space=vmem, size = 0x1000, scoped, tag = 'input window, operand 4, single buffered']
    #allocation13 [shape = 's32[1]{0}', space=sflag, size = 0x4, scoped, tag = 'scoped memory for tpu_custom_call.1']
    #allocation14 [shape = 'u8[512]{0}', space=vmem, size = 0x400, scoped, tag = 'output window, operand 0, single buffered']
    #allocation15 [shape = 'u8[512]{0}', space=vmem, size = 0x400, scoped, tag = 'output window, operand 1, single buffered']
    #allocation16 [shape = 's32[1]{0}', space=sflag, size = 0x4, scoped, tag = 'scoped memory for tpu_custom_call.1']
    #allocation17 [shape = 'u8[512]{0}', space=vmem, size = 0x400, scoped, tag = 'output window, operand 2, single buffered']
    %18 = vsyncpa [#allocation7], 0
    %19 = vsyncpa [#allocation10], 0
    %20 = vsyncpa [#allocation13], 0
    %21 = vsyncpa [#allocation8], 0
    %22 = vsyncpa [#allocation16], 0
    // Predicated region
    $region2: #{tpu_custom_call.1} parent=1 // pred_check
      _
    $region3: #{tpu_custom_call.1} parent=1 // pred_check_branch
      %24 = sbr.rel (0) target = $region5
    $region4: #{tpu_custom_call.1} parent=1 // pred_region
      %s26 = ssub.s32 128, 128
      %27 = vsyncadd [#allocation7], %s26
      %s29 = sshll.u32 [#allocation6], 4
      %s30 = int_to_ptr.vmem [resolvable:$true] %s29
      %32 = dma.hbm_to_vmem [thread:$0]  %s0, 128, %s30, [#allocation7]
    $region5: #{tpu_custom_call.1} parent=1 // pred_fallthru
      _
    // Predicated region
    $region6: #{tpu_custom_call.1} parent=1 // pred_check
      _
    $region7: #{tpu_custom_call.1} parent=1 // pred_check_branch
      %34 = sbr.rel (0) target = $region9
    $region8: #{tpu_custom_call.1} parent=1 // pred_region
      %s36 = ssub.s32 128, 128
      %37 = vsyncadd [#allocation10], %s36
      %s39 = sshll.u32 [#allocation9], 4
      %s40 = int_to_ptr.vmem [resolvable:$true] %s39
      %42 = dma.hbm_to_vmem [thread:$0]  %s1, 128, %s40, [#allocation10]
    $region9: #{tpu_custom_call.1} parent=1 // pred_fallthru
      _
    // Predicated region
    $region10: #{tpu_custom_call.1} parent=1 // pred_check
      _
    $region11: #{tpu_custom_call.1} parent=1 // pred_check_branch
      %44 = sbr.rel (0) target = $region13
    $region12: #{tpu_custom_call.1} parent=1 // pred_region
      %s46 = ssub.s32 128, 128
      %47 = vsyncadd [#allocation10], %s46
      %s49 = sshll.u32 [#allocation11], 4
      %s50 = int_to_ptr.vmem [resolvable:$true] %s49
      %52 = dma.hbm_to_vmem [thread:$0]  %s2, 128, %s50, [#allocation10]
    $region13: #{tpu_custom_call.1} parent=1 // pred_fallthru
      _
    // Predicated region
    $region14: #{tpu_custom_call.1} parent=1 // pred_check
      _
    $region15: #{tpu_custom_call.1} parent=1 // pred_check_branch
      %54 = sbr.rel (0) target = $region17
    $region16: #{tpu_custom_call.1} parent=1 // pred_region
      _
    $region17: #{tpu_custom_call.1} parent=1 // pred_fallthru
      _
    // Predicated region
    $region18: #{tpu_custom_call.1} parent=1 // pred_check
      _
    $region19: #{tpu_custom_call.1} parent=1 // pred_check_branch
      %56 = sbr.rel (0) target = $region21
    $region20: #{tpu_custom_call.1} parent=1 // pred_region
      %s58 = ssub.s32 128, 128
      %59 = vsyncadd [#allocation13], %s58
      %s61 = sshll.u32 [#allocation12], 4
      %s62 = int_to_ptr.vmem [resolvable:$true] %s61
      %64 = dma.hbm_to_vmem [thread:$0]  %s4, 128, %s62, [#allocation13]
    $region21: #{tpu_custom_call.1} parent=1 // pred_fallthru
      _
    // Predicated region
    $region22: #{tpu_custom_call.1} parent=1 // pred_check
      _
    $region23: #{tpu_custom_call.1} parent=1 // pred_check_branch
      %66 = sbr.rel (0) target = $region25
    $region24: #{tpu_custom_call.1} parent=1 // pred_region
      _
    $region25: #{tpu_custom_call.1} parent=1 // pred_fallthru
      _
    // Predicated region
    $region26: #{tpu_custom_call.1} parent=1 // pred_check
      _
    $region27: #{tpu_custom_call.1} parent=1 // pred_check_branch
      %68 = sbr.rel (0) target = $region29
    $region28: #{tpu_custom_call.1} parent=1 // pred_region
      _
    $region29: #{tpu_custom_call.1} parent=1 // pred_fallthru
      _
    // Predicated region
    $region30: #{tpu_custom_call.1} parent=1 // pred_check
      _
    $region31: #{tpu_custom_call.1} parent=1 // pred_check_branch
      %70 = sbr.rel (0) target = $region33
    $region32: #{tpu_custom_call.1} parent=1 // pred_region
      _
    $region33: #{tpu_custom_call.1} parent=1 // pred_fallthru
      _
    // Predicated region
    $region34: #{tpu_custom_call.1} parent=1 // pred_check
      _
    $region35: #{tpu_custom_call.1} parent=1 // pred_check_branch
      %72 = sbr.rel (0) target = $region37
    $region36: #{tpu_custom_call.1} parent=1 // pred_region
      _
    $region37: #{tpu_custom_call.1} parent=1 // pred_fallthru
      _
    // Predicated region
    $region38: #{tpu_custom_call.1} parent=1 // pred_check
      _
    $region39: #{tpu_custom_call.1} parent=1 // pred_check_branch
      %74 = sbr.rel (0) target = $region41
    $region40: #{tpu_custom_call.1} parent=1 // pred_region
      _
    $region41: #{tpu_custom_call.1} parent=1 // pred_fallthru
      _
    // Predicated region
    $region42: #{tpu_custom_call.1} parent=1 // pred_check
      _
    $region43: #{tpu_custom_call.1} parent=1 // pred_check_branch
      %76 = sbr.rel (0) target = $region45
    $region44: #{tpu_custom_call.1} parent=1 // pred_region
      %77 = dma.done [#allocation7], 128
    $region45: #{tpu_custom_call.1} parent=1 // pred_fallthru
      _
    // Predicated region
    $region46: #{tpu_custom_call.1} parent=1 // pred_check
      _
    $region47: #{tpu_custom_call.1} parent=1 // pred_check_branch
      %79 = sbr.rel (0) target = $region49
    $region48: #{tpu_custom_call.1} parent=1 // pred_region
      %80 = dma.done [#allocation10], 128
    $region49: #{tpu_custom_call.1} parent=1 // pred_fallthru
      _
    // Predicated region
    $region50: #{tpu_custom_call.1} parent=1 // pred_check
      _
    $region51: #{tpu_custom_call.1} parent=1 // pred_check_branch
      %82 = sbr.rel (0) target = $region53
    $region52: #{tpu_custom_call.1} parent=1 // pred_region
      %83 = dma.done [#allocation10], 128
    $region53: #{tpu_custom_call.1} parent=1 // pred_fallthru
      _
    // Predicated region
    $region54: #{tpu_custom_call.1} parent=1 // pred_check
      _
    $region55: #{tpu_custom_call.1} parent=1 // pred_check_branch
      %85 = sbr.rel (0) target = $region57
    $region56: #{tpu_custom_call.1} parent=1 // pred_region
      %86 = dma.done [#allocation13], 128
    $region57: #{tpu_custom_call.1} parent=1 // pred_fallthru
      _
    %p87 = scmp.eq.s32.totalorder 0, 0
    // Predicated region
    $region58: #{tpu_custom_call.1} parent=1 // pred_check
      %p88 = pneg %p87
    $region59: #{tpu_custom_call.1} parent=1 // pred_check_branch
      %90 = sbr.rel (%p88) target = $region61
    $region60: #{tpu_custom_call.1} parent=1 // pred_region
      %91 = vst [vmem:[#allocation2] sm:$0xff] 0.0
      %92 = vst [vmem:[#allocation3] sm:$0xff] 0.0
      %93 = vst [vmem:[#allocation4] sm:$0xff] 0.0
      %94 = vst [vmem:[#allocation5] sm:$0x1] 0.0
    $region61: #{tpu_custom_call.1} parent=1 // pred_fallthru
      _
    %v95 = vld [vmem:[#allocation6] sm:$0xff]
    %v96 = vld [vmem:[#allocation9] sm:$0xff]
    %v97 = vand.u32 2147483647, %v95
    %v98 = vsub.f32 0.0, %v97
    %v99 = vmul.f32 %v98, 1.442695
    %v100 = vpow.pop %v99
    %v101 = vadd.f32 %v100, 1.0
    %v102 = vmax.f32 %v95, 0.0
    %v103 = vmul.f32 %v95, %v96
    %v104 = vsub.f32 %v102, %v103
    %v105 = vlog2.pop %v101
    %v106 = vmul.f32 %v105, 0.6931472
    %v107 = vadd.f32 %v104, %v106
    %v108 = vld [vmem:[#allocation2] sm:$0xff]
    %v109 = vadd.f32 %v108, %v107
    %110 = vst [vmem:[#allocation2] sm:$0xff] %v109
    %v111 = vld [vmem:[#allocation11] sm:$0xff]
    %v112 = vld [vmem:[%s3] sm:$0xff]
    %v113 = vsub.f32 %v111, %v112
    %v114 = vmul.f32 %v113, %v113
    %v115 = vld [vmem:[#allocation3] sm:$0xff]
    %v116 = vadd.f32 %v115, %v114
    %117 = vst [vmem:[#allocation3] sm:$0xff] %v116
    %v118 = vld [vmem:[#allocation12] sm:$0xff]
    %v119 = vld [vmem:[%s5] sm:$0xff]
    %v120 = vand.u32 2147483647, %v118
    %v121 = vsub.f32 0.0, %v120
    %v122 = vmul.f32 %v121, 1.442695
    %v123 = vpow.pop %v122
    %v124 = vadd.f32 %v123, 1.0
    %v125 = vmax.f32 %v118, 0.0
    %v126 = vmul.f32 %v118, %v119
    %v127 = vsub.f32 %v125, %v126
    %v128 = vlog2.pop %v124
    %v129 = vmul.f32 %v128, 0.6931472
    %v130 = vadd.f32 %v127, %v129
    %v131 = vrcp.pop %v124
    %vm132 = vcmp.ge.f32.partialorder %v118, 0.0
    %v133 = vmul.f32 %v123, %v131
    %v134 = vsel %vm132, %v131, %v133
    %v135 = vsub.f32 1.0, %v119
    %v136 = vmul.f32 %v119, 2.0
    %v137 = vsub.f32 %v136, 1.0
    %v138 = vmul.f32 %v137, %v134
    %v139 = vadd.f32 %v135, %v138
    %v140 = vsub.f32 1.0, %v139
    %v141 = vmul.f32 %v140, %v140
    %v142 = vmul.f32 %v141, %v130
    %v143 = vld [vmem:[#allocation4] sm:$0xff]
    %v144 = vadd.f32 %v143, %v142
    %145 = vst [vmem:[#allocation4] sm:$0xff] %v144
    %v146 = vld [vmem:[%s6] sm:$0xf]
    %v147 = vld [vmem:[%s7] sm:$0x1]
    %vm148 = vcmask 1043456
    %v149 = vsel %vm148, %v146, -inf
    %v150 = vrot.slane %v149, 4
    %v151 = vmax.f32 %v149, %v150
    %v152 = vrot.slane %v151, 2
    %v153 = vmax.f32 %v151, %v152
    %v154 = vrot.slane %v153, 1
    %v155 = vmax.f32 %v153, %v154
    %v156 = vsub.f32 %v146, %v155
    %v157 = vmul.f32 %v156, 1.442695
    %v158 = vpow.pop %v157
    %v159 = vsel %vm148, %v158, 0.0
    %v160 = vrot.slane %v159, 4
    %v161 = vadd.f32 %v159, %v160
    %v162 = vrot.slane %v161, 2
    %v163 = vadd.f32 %v161, %v162
    %v164 = vrot.slane %v163, 1
    %v165 = vadd.f32 %v163, %v164
    %v166 = vlog2.pop %v165
    %v167 = vmul.f32 %v166, 0.6931472
    %v168 = vadd.f32 %v155, %v167
    %v169 = vlaneseq
    %v170 = vshrl.u32 %v169, 7
    %v171 = vlaneseq
    %v172 = vshrl.u32 %v171, 7
    %v173 = vsub.s32 0, %v172
    %v174 = vrot.slane %v147, %v173
    %vm175 = vcmp.eq.s32.totalorder %v170, %v174
    %v176 = vsel %vm175, %v146, 0.0
    %v177 = vsel %vm148, %v176, 0.0
    %v178 = vrot.slane %v177, 4
    %v179 = vadd.f32 %v177, %v178
    %v180 = vrot.slane %v179, 2
    %v181 = vadd.f32 %v179, %v180
    %v182 = vrot.slane %v181, 1
    %v183 = vadd.f32 %v181, %v182
    %v184 = vsub.f32 %v168, %v183
    %v185 = vld [vmem:[#allocation5] sm:$0x1]
    %v186 = vadd.f32 %v185, %v184
    %187 = vst [vmem:[#allocation5] sm:$0x1] %v186
    // Predicated region
    $region62: #{tpu_custom_call.1} parent=1 // pred_check
      %p188 = pneg %p87
    $region63: #{tpu_custom_call.1} parent=1 // pred_check_branch
      %190 = sbr.rel (%p188) target = $region65
    $region64: #{tpu_custom_call.1} parent=1 // pred_region
      %v191 = vlaneseq
      %v192 = vand.u32 %v191, 127
      %v193 = vld [vmem:[#allocation2] sm:$0xff]
      %194 = vadd.xlane.f32.xlu0 %v193
      %v195 = vpop.xlane.xlu0 %194
      %v196 = vrot.slane %v195, 4
      %v197 = vadd.f32 %v195, %v196
      %v198 = vrot.slane %v197, 2
      %v199 = vadd.f32 %v197, %v198
      %v200 = vrot.slane %v199, 1
      %v201 = vadd.f32 %v199, %v200
      %s202 = vtos %v201
      %v203 = vrcp.pop 8.0
      %s204 = vtos %v203
      %s205 = smul.f32 %s202, %s204
      %vm206 = vcmp.eq.s32.totalorder %v192, 0
      %v207 = vstv %s205
      %v208 = vsel %vm206, %v207, 0.0
      %v209 = vld [vmem:[#allocation3] sm:$0xff]
      %210 = vadd.xlane.f32.xlu0 %v209
      %v211 = vpop.xlane.xlu0 %210
      %v212 = vrot.slane %v211, 4
      %v213 = vadd.f32 %v211, %v212
      %v214 = vrot.slane %v213, 2
      %v215 = vadd.f32 %v213, %v214
      %v216 = vrot.slane %v215, 1
      %v217 = vadd.f32 %v215, %v216
      %s218 = vtos %v217
      %v219 = vrcp.pop 8.0
      %s220 = vtos %v219
      %s221 = smul.f32 %s218, %s220
      %vm222 = vcmp.eq.s32.totalorder %v192, 1
      %v223 = vstv %s221
      %v224 = vsel %vm222, %v223, %v208
      %v225 = vld [vmem:[#allocation4] sm:$0xff]
      %226 = vadd.xlane.f32.xlu0 %v225
      %v227 = vpop.xlane.xlu0 %226
      %v228 = vrot.slane %v227, 4
      %v229 = vadd.f32 %v227, %v228
      %v230 = vrot.slane %v229, 2
      %v231 = vadd.f32 %v229, %v230
      %v232 = vrot.slane %v231, 1
      %v233 = vadd.f32 %v231, %v232
      %s234 = vtos %v233
      %v235 = vrcp.pop 8.0
      %s236 = vtos %v235
      %s237 = smul.f32 %s234, %s236
      %vm238 = vcmp.eq.s32.totalorder %v192, 2
      %v239 = vstv %s237
      %v240 = vsel %vm238, %v239, %v224
      %v241 = vld [vmem:[#allocation5] sm:$0x1]
      %vm242 = vcmask 1040384
      %v243 = vsel %vm242, %v241, 0.0
      %244 = vadd.xlane.f32.xlu0 %v243
      %v245 = vpop.xlane.xlu0 %244
      %v246 = vrot.slane %v245, 4
      %v247 = vadd.f32 %v245, %v246
      %v248 = vrot.slane %v247, 2
      %v249 = vadd.f32 %v247, %v248
      %v250 = vrot.slane %v249, 1
      %v251 = vadd.f32 %v249, %v250
      %s252 = vtos %v251
      %v253 = vrcp.pop 8.0
      %s254 = vtos %v253
      %s255 = smul.f32 %s252, %s254
      %vm256 = vcmp.eq.s32.totalorder %v192, 3
      %v257 = vstv %s255
      %v258 = vsel %vm256, %v257, %v240
      %v259 = vld [vmem:[%s8] sm:$0x1]
      %v260 = vld [vmem:[%s9] sm:$0x1]
      %v261 = vsub.f32 0.0, %v259
      %v262 = vmul.f32 %v261, 1.442695
      %v263 = vpow.pop %v262
      %v264 = vmul.f32 %v263, %v258
      %v265 = vadd.f32 %v264, %v259
      %v266 = vmul.f32 %v260, %v265
      %v267 = vsel %vm242, %v266, 0.0
      %268 = vadd.xlane.f32.xlu0 %v267
      %v269 = vpop.xlane.xlu0 %268
      %v270 = vrot.slane %v269, 4
      %v271 = vadd.f32 %v269, %v270
      %v272 = vrot.slane %v271, 2
      %v273 = vadd.f32 %v271, %v272
      %v274 = vrot.slane %v273, 1
      %v275 = vadd.f32 %v273, %v274
      %s276 = vtos %v275
      %277 = vst [vmem:[#allocation14] sm:$0x1] %v258
      %278 = vst [vmem:[#allocation15] sm:$0x1] %v263
      %v279 = vstv %s276
      %v280 = vsel %vm206, %v279, 0.0
      %281 = vst [vmem:[#allocation17] sm:$0x1] %v280
    $region65: #{tpu_custom_call.1} parent=1 // pred_fallthru
      _
    // Predicated region
    $region66: #{tpu_custom_call.1} parent=1 // pred_check
      _
    $region67: #{tpu_custom_call.1} parent=1 // pred_check_branch
      %283 = sbr.rel (0) target = $region69
    $region68: #{tpu_custom_call.1} parent=1 // pred_region
      %s285 = ssub.s32 16, 16
      %286 = vsyncadd [#allocation8], %s285
      %s288 = sshll.u32 [#allocation14], 4
      %s289 = int_to_ptr.vmem [resolvable:$true] %s288
      %291 = dma.vmem_to_hbm [thread:$0]  %s289, 16, %s10, [#allocation8]
    $region69: #{tpu_custom_call.1} parent=1 // pred_fallthru
      _
    // Predicated region
    $region70: #{tpu_custom_call.1} parent=1 // pred_check
      _
    $region71: #{tpu_custom_call.1} parent=1 // pred_check_branch
      %293 = sbr.rel (0) target = $region73
    $region72: #{tpu_custom_call.1} parent=1 // pred_region
      %s295 = ssub.s32 16, 16
      %296 = vsyncadd [#allocation16], %s295
      %s298 = sshll.u32 [#allocation15], 4
      %s299 = int_to_ptr.vmem [resolvable:$true] %s298
      %301 = dma.vmem_to_hbm [thread:$0]  %s299, 16, %s11, [#allocation16]
    $region73: #{tpu_custom_call.1} parent=1 // pred_fallthru
      _
    // Predicated region
    $region74: #{tpu_custom_call.1} parent=1 // pred_check
      _
    $region75: #{tpu_custom_call.1} parent=1 // pred_check_branch
      %303 = sbr.rel (0) target = $region77
    $region76: #{tpu_custom_call.1} parent=1 // pred_region
      %s305 = ssub.s32 16, 16
      %306 = vsyncadd [#allocation16], %s305
      %s308 = sshll.u32 [#allocation17], 4
      %s309 = int_to_ptr.vmem [resolvable:$true] %s308
      %311 = dma.vmem_to_hbm [thread:$0]  %s309, 16, %s12, [#allocation16]
    $region77: #{tpu_custom_call.1} parent=1 // pred_fallthru
      _
    // Predicated region
    $region78: #{tpu_custom_call.1} parent=1 // pred_check
      _
    $region79: #{tpu_custom_call.1} parent=1 // pred_check_branch
      %313 = sbr.rel (0) target = $region81
    $region80: #{tpu_custom_call.1} parent=1 // pred_region
      %314 = dma.done [#allocation8], 16
    $region81: #{tpu_custom_call.1} parent=1 // pred_fallthru
      _
    // Predicated region
    $region82: #{tpu_custom_call.1} parent=1 // pred_check
      _
    $region83: #{tpu_custom_call.1} parent=1 // pred_check_branch
      %316 = sbr.rel (0) target = $region85
    $region84: #{tpu_custom_call.1} parent=1 // pred_region
      %317 = dma.done [#allocation16], 16
    $region85: #{tpu_custom_call.1} parent=1 // pred_fallthru
      _
    // Predicated region
    $region86: #{tpu_custom_call.1} parent=1 // pred_check
      _
    $region87: #{tpu_custom_call.1} parent=1 // pred_check_branch
      %319 = sbr.rel (0) target = $region89
    $region88: #{tpu_custom_call.1} parent=1 // pred_region
      %320 = dma.done [#allocation16], 16
    $region89: #{tpu_custom_call.1} parent=1 // pred_fallthru
      _
    %321 = vsyncpa [#allocation7], 1
    %322 = vsyncpa [#allocation10], 1
    %323 = vsyncpa [#allocation13], 1
    %324 = vsyncpa [#allocation8], 1
    %325 = vsyncpa [#allocation16], 1

</llo_original>
